<compile_context>
chip_gen: v5e
topology: v5e:2x2
jax: 0.10.0
libtpu: 0.0.40
codegen_flags: <defaults>
</compile_context>

<pallas_src>
import random

import jax
import jax.numpy as jnp
from jax.experimental import pallas as pl
from jax.experimental.pallas import tpu as pltpu


def _round_up(x: int, m: int) -> int:
    return ((x + m - 1) // m) * m


def _add_noise_kernel(x_ref, n_ref, o_ref):
    # x_ref: (TB, TF) input block, n_ref: (1, TF) noise block (broadcast over
    # the sublane/batch axis), o_ref: (TB, TF) output block.
    o_ref[...] = (x_ref[...] + n_ref[...]).astype(o_ref.dtype)


def shredder_noisy_activation(x_nchw: jax.Array, noise_chw: jax.Array) -> jax.Array:
    """out = x + noise, noise broadcast over the batch dim (PyTorch semantics)."""
    N, C, H, W = x_nchw.shape
    assert noise_chw.shape == (C, H, W)
    F = C * H * W
    dtype = x_nchw.dtype
    itemsize = jnp.dtype(dtype).itemsize

    x2d = x_nchw.reshape(N, F)
    # Noise travels in the activation dtype (halves HBM bytes for bf16 nets).
    # NOTE: this differs from PyTorch type promotion (bf16 in + f32 noise -> f32);
    # documented bandwidth tradeoff.
    n2d = noise_chw.astype(dtype).reshape(1, F)

    # ---- tile selection -----------------------------------------------------
    BLOCK_BYTES = 4 << 20                      # ~4 MiB x-block target
    pack = max(8, 32 // itemsize)              # sublane packing: f32->8, bf16->16, i8->32

    # Feature (lane) tile.
    F_pad = F
    pad_f = 0
    if F % 128 == 0:
        if pack * F * itemsize <= BLOCK_BYTES:
            TF = F                             # full contiguous row per block
        else:
            TF = max(128, min(F, (BLOCK_BYTES // (pack * itemsize)) // 128 * 128))
    else:
        if F * itemsize <= BLOCK_BYTES:
            TF = F                             # full (unaligned) row == full dim: allowed, no pad copy
        else:
            # Rare fallback: huge non-128-aligned feature dim -> pad only to 128.
            F_pad = _round_up(F, 128)
            pad_f = F_pad - F
            TF = max(128, min(F_pad, (BLOCK_BYTES // (pack * itemsize)) // 128 * 128))

    # Batch (sublane) tile.
    max_rows = max(pack, (BLOCK_BYTES // (TF * itemsize)) // pack * pack)
    if N <= max_rows:
        TB = N                                 # full batch dim: allowed even if not a pack multiple
    else:
        TB = max_rows                          # pack multiple; edge block masked via cdiv grid

    # v7x has 2 TensorCores: if everything collapsed into one non-trivial block,
    # split one axis so both cores get work (free on v5e/v6e).
    grid_f = pl.cdiv(F_pad, TF)
    grid_b = pl.cdiv(N, TB)
    if grid_f * grid_b == 1 and TB * TF * itemsize > (1 << 20):
        if N >= 2 * pack:
            TB = _round_up((N + 1) // 2, pack)
        elif TF % 256 == 0:
            TF = TF // 2
        grid_f = pl.cdiv(F_pad, TF)
        grid_b = pl.cdiv(N, TB)

    if pad_f:
        x2d = jnp.pad(x2d, ((0, 0), (0, pad_f)))
        n2d = jnp.pad(n2d, ((0, 0), (0, pad_f)))

    # Batch axis innermost -> noise block index constant across inner steps
    # (stays VMEM-resident, no re-DMA).
    grid = (grid_f, grid_b)

    # Double-buffered x, noise, out tiles; stay within v7x's 32 MiB scoped VMEM.
    vmem_need = 2 * (2 * TB * TF + TF) * itemsize
    vmem_limit = int(min(max(int(vmem_need * 1.5), 16 << 20), 32 << 20))

    cost = pl.CostEstimate(
        flops=N * F,
        transcendentals=0,
        bytes_accessed=2 * N * F * itemsize + F * itemsize,
    )

    out2d = pl.pallas_call(
        _add_noise_kernel,
        out_shape=jax.ShapeDtypeStruct((N, F_pad), dtype),
        grid_spec=pltpu.PrefetchScalarGridSpec(
            num_scalar_prefetch=0,
            grid=grid,
            in_specs=[
                pl.BlockSpec((TB, TF), lambda f, b: (b, f)),   # x tile
                pl.BlockSpec((1, TF), lambda f, b: (0, f)),    # noise tile (resident over batch)
            ],
            out_specs=pl.BlockSpec((TB, TF), lambda f, b: (b, f)),
        ),
        compiler_params=pltpu.CompilerParams(
            dimension_semantics=("parallel", "parallel"),
            vmem_limit_bytes=vmem_limit,
        ),
        cost_estimate=cost,
    )(x2d, n2d)

    if pad_f:
        out2d = out2d[:, :F]
    return out2d.reshape(N, C, H, W)


class ShredderNoisyActivationJAX:
    """JAX/Pallas mirror of ShredderNoisyActivation (forward pass only)."""

    def __init__(self, activation_size, loc=0.0, scale=20.0, key=None,
                 dtype=jnp.float32):
        self.activation_size = tuple(activation_size)
        self.loc = loc
        self.scale = scale
        key = jax.random.PRNGKey(0) if key is None else key
        k_train, k_eval = jax.random.split(key)
        # Laplace(loc, scale) sample (mirrors m.rsample(activation_size)),
        # stored in the activation dtype so the kernel's noise read is cheap.
        self.train_noise = (
            jax.random.laplace(k_train, self.activation_size, dtype=jnp.float32)
            * self.scale + self.loc
        ).astype(dtype)
        # TODO(synk): sample_noise_tensor's scipy distribution fit + argsort
        # re-matching is host-side preprocessing, not a kernel; eval_noise is
        # populated here with an independent deterministic Laplace draw.
        self.eval_noise = [
            (jax.random.laplace(k_eval, self.activation_size, dtype=jnp.float32)
             * self.scale + self.loc).astype(dtype)
        ]
        self.training = True

    def __call__(self, x):
        if self.training:
            noise = self.train_noise
        else:
            noise = random.choice(self.eval_noise)
        return shredder_noisy_activation(x, noise)


if __name__ == "__main__":
    key = jax.random.PRNGKey(0)
    k_x, k_mod, k_x2, k_n2 = jax.random.split(key, 4)

    N, C, H, W = 2, 4, 16, 16
    x = jax.random.normal(k_x, (N, C, H, W), dtype=jnp.float32)

    module = ShredderNoisyActivationJAX(activation_size=(C, H, W), key=k_mod)

    # Training-mode forward (input + train_noise) through the Pallas kernel.
    out_train = jax.block_until_ready(module(x))
    ref_train = x + module.train_noise[None]
    assert out_train.shape == (N, C, H, W)
    assert jnp.allclose(out_train, ref_train, atol=1e-6, rtol=1e-6)

    # Eval-mode forward (input + random.choice(eval_noise)), same kernel.
    module.training = False
    out_eval = jax.block_until_ready(module(x))
    ref_eval = x + module.eval_noise[0][None]
    assert jnp.allclose(out_eval, ref_eval, atol=1e-6, rtol=1e-6)

    # bf16 path: noise cast to activation dtype in the wrapper, explicit
    # output-dtype cast in the kernel (dtype-aware sublane packing, TB=16-mult).
    x_bf16 = x.astype(jnp.bfloat16)
    out_bf16 = jax.block_until_ready(shredder_noisy_activation(x_bf16, module.train_noise))
    ref_bf16 = x_bf16 + module.train_noise.astype(jnp.bfloat16)[None]
    assert out_bf16.dtype == jnp.bfloat16
    assert jnp.allclose(out_bf16.astype(jnp.float32), ref_bf16.astype(jnp.float32),
                        atol=1e-2, rtol=1e-2)

    # Non-128-aligned feature dim (C*H*W = 3*5*7 = 105): full-dim block, no pad.
    C2, H2, W2 = 3, 5, 7
    x_small = jax.random.normal(k_x2, (N, C2, H2, W2), dtype=jnp.float32)
    noise_small = (jax.random.laplace(k_n2, (C2, H2, W2), dtype=jnp.float32) * 20.0)
    out_small = jax.block_until_ready(shredder_noisy_activation(x_small, noise_small))
    ref_small = x_small + noise_small[None]
    assert jnp.allclose(out_small, ref_small, atol=1e-6, rtol=1e-6)

    print("KERNEL_OK")
</pallas_src>

<mosaic_0001>
module attributes {stable_mosaic.version = 11 : i64} {
  func.func @_add_noise_kernel(%arg0: i32, %arg1: i32, %arg2: memref<2x1024xf32, #tpu.memory_space<vmem>>, %arg3: memref<1x1024xf32, #tpu.memory_space<vmem>>, %arg4: memref<2x1024xf32, #tpu.memory_space<vmem>>) attributes {dimension_semantics = [#tpu.dimension_semantics<parallel>, #tpu.dimension_semantics<parallel>], iteration_bounds = array<i64: 1, 1>, scalar_prefetch = 0 : i64, scratch_operands = 0 : i64, tpu.core_type = #tpu.core_type<tc>, window_params = [{transform_indices = @transform_0, window_bounds = array<i64: 2, 1024>}, {transform_indices = @transform_1, window_bounds = array<i64: 1, 1024>}, {transform_indices = @transform_2, window_bounds = array<i64: 2, 1024>}]} {
    %c0 = arith.constant 0 : index
    %c0_0 = arith.constant 0 : index
    %0 = vector.load %arg2[%c0, %c0_0] : memref<2x1024xf32, #tpu.memory_space<vmem>>, vector<2x1024xf32>
    %c0_1 = arith.constant 0 : index
    %c0_2 = arith.constant 0 : index
    %1 = vector.load %arg3[%c0_1, %c0_2] : memref<1x1024xf32, #tpu.memory_space<vmem>>, vector<1x1024xf32>
    %2 = vector.broadcast %1 : vector<1x1024xf32> to vector<2x1024xf32>
    %3 = arith.addf %0, %2 : vector<2x1024xf32>
    %c0_3 = arith.constant 0 : index
    %c0_4 = arith.constant 0 : index
    %4 = vector.load %arg4[%c0_3, %c0_4] : memref<2x1024xf32, #tpu.memory_space<vmem>>, vector<2x1024xf32>
    tpu.vector_store %arg4[%c0_3, %c0_4], %3 {strides = array<i32>} : memref<2x1024xf32, #tpu.memory_space<vmem>>, vector<2x1024xf32>,
    return
  }
  func.func @transform_0(%arg0: i32, %arg1: i32) -> (i32, i32) {
    %c0_i32 = arith.constant 0 : i32
    return %arg1, %arg0 : i32, i32
  }
  func.func @transform_1(%arg0: i32, %arg1: i32) -> (i32, i32) {
    %c0_i32 = arith.constant 0 : i32
    %c0_i32_0 = arith.constant 0 : i32
    return %c0_i32, %arg0 : i32, i32
  }
  func.func @transform_2(%arg0: i32, %arg1: i32) -> (i32, i32) {
    %c0_i32 = arith.constant 0 : i32
    return %arg1, %arg0 : i32, i32
  }
}

</mosaic_0001>

<llo_original>
// kernel: tpu_custom_call.1
$region0: #{tpu_custom_call.1}
  #allocation0 [shape = 'u32[]', space=smem, size = 0x4, offset = 0x4, fixed_abs, tag = 'smem constant byte address 0x4 - core index']
  #allocation1 [shape = 'u32[72,128]{1,0:T(1,128)}', space=vmem, size = 0x9000, scoped, tag = 'internal scratch']
  %s0 = inlined_call_operand.hbm [shape: f32[2,1024], index: 0, kind: input, shape index: {}]
  %s1 = inlined_call_operand.hbm [shape: f32[1,1024], index: 1, kind: input, shape index: {}]
  %s2 = inlined_call_operand.hbm [shape: f32[2,1024], index: 2, kind: output, shape index: {}]
  %s3 = sld [smem:[#allocation0]]
  $region26: #{tpu_custom_call.1} parent=0
    _
  %s5 = ssub.s32 1, %s3
  %s6 = scalar_select 0, %s5, %s3
  $region1: #{tpu_custom_call.1} parent=0
    #allocation2 [shape = 'u8[8192]{0}', space=vmem, size = 0x2000, scoped, tag = 'input window, operand 0, single buffered']
    #allocation3 [shape = 's32[1]{0}', space=sflag, size = 0x4, scoped, tag = 'scoped memory for tpu_custom_call.1']
    #allocation4 [shape = 's32[1]{0}', space=sflag, size = 0x4, scoped, tag = 'scoped memory for tpu_custom_call.1']
    #allocation5 [shape = 'u8[4096]{0}', space=vmem, size = 0x1000, scoped, tag = 'input window, operand 1, single buffered']
    #allocation6 [shape = 's32[1]{0}', space=sflag, size = 0x4, scoped, tag = 'scoped memory for tpu_custom_call.1']
    #allocation7 [shape = 'u8[8192]{0}', space=vmem, size = 0x2000, scoped, tag = 'output window, operand 0, single buffered']
    %7 = vsyncpa [#allocation3], 0
    %8 = vsyncpa [#allocation6], 0
    %9 = vsyncpa [#allocation4], 0
    // Predicated region
    $region2: #{tpu_custom_call.1} parent=1 // pred_check
      _
    $region3: #{tpu_custom_call.1} parent=1 // pred_check_branch
      %11 = sbr.rel (0) target = $region5
    $region4: #{tpu_custom_call.1} parent=1 // pred_region
      %13 = vsyncadd [#allocation3], 0
      %s15 = sshll.u32 %s0, 4
      %s16 = int_to_ptr.hbm [resolvable:$true] %s15
      %s17 = sshll.u32 [#allocation2], 4
      %s18 = int_to_ptr.vmem [resolvable:$true] %s17
      %20 = dma.hbm_to_vmem [thread:$0]  %s16, 256, %s18, [#allocation3]
    $region5: #{tpu_custom_call.1} parent=1 // pred_fallthru
      _
    // Predicated region
    $region6: #{tpu_custom_call.1} parent=1 // pred_check
      _
    $region7: #{tpu_custom_call.1} parent=1 // pred_check_branch
      %22 = sbr.rel (0) target = $region9
    $region8: #{tpu_custom_call.1} parent=1 // pred_region
      %24 = vsyncadd [#allocation6], 0
      %s26 = sshll.u32 %s1, 4
      %s27 = int_to_ptr.hbm [resolvable:$true] %s26
      %s28 = sshll.u32 [#allocation5], 4
      %s29 = int_to_ptr.vmem [resolvable:$true] %s28
      %31 = dma.hbm_to_vmem [thread:$0]  %s27, 128, %s29, [#allocation6]
    $region9: #{tpu_custom_call.1} parent=1 // pred_fallthru
      _
    // Predicated region
    $region10: #{tpu_custom_call.1} parent=1 // pred_check
      _
    $region11: #{tpu_custom_call.1} parent=1 // pred_check_branch
      %33 = sbr.rel (0) target = $region13
    $region12: #{tpu_custom_call.1} parent=1 // pred_region
      %35 = dma.done [#allocation3], 256
    $region13: #{tpu_custom_call.1} parent=1 // pred_fallthru
      _
    // Predicated region
    $region14: #{tpu_custom_call.1} parent=1 // pred_check
      _
    $region15: #{tpu_custom_call.1} parent=1 // pred_check_branch
      %37 = sbr.rel (0) target = $region17
    $region16: #{tpu_custom_call.1} parent=1 // pred_region
      %39 = dma.done [#allocation6], 128
    $region17: #{tpu_custom_call.1} parent=1 // pred_fallthru
      _
    %v40 = vld [vmem:[#allocation2] sm:$0xff]
    %v41 = vld [vmem:[#allocation2 + $0x8] sm:$0xff]
    %v42 = vld [vmem:[#allocation5] sm:$0xff]
    %v44 = vperm.slane %v42, 0
    %v45 = vperm.slane %v42, 1
    %v46 = vperm.slane %v42, 2
    %v47 = vperm.slane %v42, 3
    %v48 = vperm.slane %v42, 4
    %v49 = vperm.slane %v42, 5
    %v50 = vperm.slane %v42, 6
    %v51 = vperm.slane %v42, 7
    %v52 = vrot.slane %v45, 6
    %v53 = vrot.slane %v46, 4
    %v54 = vrot.slane %v47, 2
    %v55 = vrot.slane %v49, 6
    %v56 = vrot.slane %v50, 4
    %v57 = vrot.slane %v51, 2
    %vm58 = vcmask 1041408
    %v59 = vsel %vm58, %v44, %v52
    %vm60 = vcmask 1045508
    %v61 = vsel %vm60, %v53, %v54
    %vm62 = vcmask 1043456
    %v63 = vsel %vm62, %v59, %v61
    %v64 = vsel %vm58, %v48, %v55
    %v65 = vsel %vm60, %v56, %v57
    %v66 = vsel %vm62, %v64, %v65
    %v69 = vadd.f32 %v40, %v63
    %v70 = vadd.f32 %v41, %v66
    %71 = vst [vmem:[#allocation7] sm:$0xff] %v69
    %72 = vst [vmem:[#allocation7 + $0x8] sm:$0xff] %v70
    // Predicated region
    $region18: #{tpu_custom_call.1} parent=1 // pred_check
      _
    $region19: #{tpu_custom_call.1} parent=1 // pred_check_branch
      %74 = sbr.rel (0) target = $region21
    $region20: #{tpu_custom_call.1} parent=1 // pred_region
      %76 = vsyncadd [#allocation4], 0
      %s78 = sshll.u32 [#allocation7], 4
      %s79 = int_to_ptr.vmem [resolvable:$true] %s78
      %s80 = sshll.u32 %s2, 4
      %s81 = int_to_ptr.hbm [resolvable:$true] %s80
      %83 = dma.vmem_to_hbm [thread:$0]  %s79, 256, %s81, [#allocation4]
    $region21: #{tpu_custom_call.1} parent=1 // pred_fallthru
      _
    // Predicated region
    $region22: #{tpu_custom_call.1} parent=1 // pred_check
      _
    $region23: #{tpu_custom_call.1} parent=1 // pred_check_branch
      %85 = sbr.rel (0) target = $region25
    $region24: #{tpu_custom_call.1} parent=1 // pred_region
      %87 = dma.done [#allocation4], 256
    $region25: #{tpu_custom_call.1} parent=1 // pred_fallthru
      _
    %88 = vsyncpa [#allocation3], 1
    %89 = vsyncpa [#allocation6], 1
    %90 = vsyncpa [#allocation4], 1

</llo_original>
